<compile_context>
chip_gen: v7x
topology: tpu7x:2x2x1
jax: 0.10.0
libtpu: 0.0.40
codegen_flags: <defaults>
</compile_context>

<pallas_src>
import jax
import jax.numpy as jnp
from jax.experimental import pallas as pl
from jax.experimental.pallas import tpu as pltpu

# Logical (PyTorch) dims; hidden lanes padded to a multiple of 128 (3 dense vregs).
IN_DIM, HID_DIM, OUT_DIM = 225, 300, 225
HID_PAD = 384


def _round_up(n, m):
    return ((n + m - 1) // m) * m


def net_kernel(x_ref, w1_ref, b1_ref, w2_ref, b2_ref, o_ref):
    # fc1 + relu: bf16 MXU operands, f32 accumulation. Padded hidden lanes
    # (300..383) see zero w1 columns and zero b1 -> relu(0) == 0, and the
    # corresponding w2 rows are zero, so they contribute nothing downstream.
    h = jnp.dot(x_ref[...], w1_ref[...], preferred_element_type=jnp.float32)
    h = jnp.maximum(h + b1_ref[...], 0.0)                       # (TB, 384)
    # fc2
    z = jnp.dot(h.astype(jnp.bfloat16), w2_ref[...],
                preferred_element_type=jnp.float32)
    z = z + b2_ref[...]                                         # (TB, 225)
    # Softmax over the feature axis, fully in f32 (bias add and z-max stay f32).
    z = z - jnp.max(z, axis=1, keepdims=True)
    e = jnp.exp(z)
    o_ref[...] = e * pl.reciprocal(jnp.sum(e, axis=1, keepdims=True), approx=True)


def prepare_params(w1, b1, w2, b2):
    """One-time prep: weights -> bf16, stored as (in, out), hidden dim padded to 384.

    w1: (IN_DIM, HID_DIM), b1: (HID_DIM,), w2: (HID_DIM, OUT_DIM), b2: (OUT_DIM,)
    """
    w1p = jnp.zeros((IN_DIM, HID_PAD), jnp.bfloat16).at[:, :HID_DIM].set(
        w1.astype(jnp.bfloat16))
    b1p = jnp.zeros((1, HID_PAD), jnp.float32).at[:, :HID_DIM].set(
        b1.reshape(1, HID_DIM).astype(jnp.float32))
    w2p = jnp.zeros((HID_PAD, OUT_DIM), jnp.bfloat16).at[:HID_DIM, :].set(
        w2.astype(jnp.bfloat16))
    b2p = b2.reshape(1, OUT_DIM).astype(jnp.float32)
    return w1p, b1p, w2p, b2p


def _choose_tiling(B):
    """Batch tiling: big tiles to amortize per-step overhead, >=2 grid steps when
    possible so the parallel axis shards across v7x's 2 TensorCores."""
    if B >= 1024:
        tile_b = 512
    elif B >= 64:
        tile_b = _round_up(_round_up(B, 16) // 2, 16)   # exactly two grid steps
    else:
        tile_b = _round_up(B, 16)                       # tiny batch, single step
    b_pad = _round_up(B, tile_b)
    return b_pad, tile_b


@jax.jit
def _net_forward_pallas(x, w1p, b1p, w2p, b2p):
    """x: (B, 225) f32 -> (B, 225) f32 softmax probabilities (Pallas path)."""
    B = x.shape[0]
    b_pad, tile_b = _choose_tiling(B)
    grid = (b_pad // tile_b,)

    # Feed x as bf16; fold any batch padding into the same cast (single pass).
    if b_pad == B:
        xp = x.astype(jnp.bfloat16)
    else:
        xp = jnp.zeros((b_pad, IN_DIM), jnp.bfloat16).at[:B, :].set(
            x.astype(jnp.bfloat16))

    bytes_accessed = (b_pad * IN_DIM * 2              # x in (bf16)
                      + IN_DIM * HID_PAD * 2          # w1 (bf16, resident)
                      + HID_PAD * OUT_DIM * 2         # w2 (bf16, resident)
                      + HID_PAD * 4 + OUT_DIM * 4     # biases (f32)
                      + b_pad * OUT_DIM * 4)          # out (f32)
    flops = 2 * b_pad * (IN_DIM * HID_PAD + HID_PAD * OUT_DIM)

    out = pl.pallas_call(
        net_kernel,
        out_shape=jax.ShapeDtypeStruct((b_pad, OUT_DIM), jnp.float32),
        grid=grid,
        in_specs=[
            pl.BlockSpec((tile_b, IN_DIM), lambda i: (i, 0)),     # x tile streams (bf16)
            pl.BlockSpec((IN_DIM, HID_PAD), lambda i: (0, 0)),    # w1 resident in VMEM
            pl.BlockSpec((1, HID_PAD), lambda i: (0, 0)),         # b1 resident
            pl.BlockSpec((HID_PAD, OUT_DIM), lambda i: (0, 0)),   # w2 resident
            pl.BlockSpec((1, OUT_DIM), lambda i: (0, 0)),         # b2 resident
        ],
        out_specs=pl.BlockSpec((tile_b, OUT_DIM), lambda i: (i, 0)),
        compiler_params=pltpu.CompilerParams(
            dimension_semantics=("parallel",)),
        cost_estimate=pl.CostEstimate(
            flops=flops,
            transcendentals=b_pad * OUT_DIM,
            bytes_accessed=bytes_accessed),
    )(xp, w1p, b1p, w2p, b2p)

    return out if b_pad == B else out[:B, :]


@jax.jit
def _net_forward_xla(x, w1p, b1p, w2p, b2p):
    """Small-batch fast path: plain fused XLA matmul+softmax (same bf16 numerics)."""
    h = jnp.maximum(jnp.dot(x.astype(jnp.bfloat16), w1p,
                            preferred_element_type=jnp.float32) + b1p, 0.0)
    z = jnp.dot(h.astype(jnp.bfloat16), w2p,
                preferred_element_type=jnp.float32) + b2p
    return jax.nn.softmax(z, axis=1)


def net_forward(x, w1p, b1p, w2p, b2p, *, force_pallas=False):
    # Below ~64 rows the op is pure latency; pallas_call fixed overhead exceeds the
    # useful work, so use XLA's fused path unless the caller forces the kernel.
    if not force_pallas and x.shape[0] < 64:
        return _net_forward_xla(x, w1p, b1p, w2p, b2p)
    return _net_forward_pallas(x, w1p, b1p, w2p, b2p)


def init_params(key):
    # Mimics nn.Linear's U(-1/sqrt(fan_in), 1/sqrt(fan_in)), stored as (in, out).
    k1, k2, k3, k4 = jax.random.split(key, 4)
    bound1 = 1.0 / jnp.sqrt(IN_DIM)
    bound2 = 1.0 / jnp.sqrt(HID_DIM)
    w1 = jax.random.uniform(k1, (IN_DIM, HID_DIM), jnp.float32, -bound1, bound1)
    b1 = jax.random.uniform(k2, (HID_DIM,), jnp.float32, -bound1, bound1)
    w2 = jax.random.uniform(k3, (HID_DIM, OUT_DIM), jnp.float32, -bound2, bound2)
    b2 = jax.random.uniform(k4, (OUT_DIM,), jnp.float32, -bound2, bound2)
    return w1, b1, w2, b2


def reference_forward(x, w1, b1, w2, b2):
    h = jnp.maximum(x @ w1 + b1[None, :], 0.0)
    z = h @ w2 + b2[None, :]
    return jax.nn.softmax(z, axis=1)


if __name__ == "__main__":
    key = jax.random.PRNGKey(0)
    kx, kp = jax.random.split(key)

    B = 8
    x = jax.random.normal(kx, (B, IN_DIM), jnp.float32)
    w1, b1, w2, b2 = init_params(kp)

    # One-time parameter prep (bf16 + hidden-lane padding), amortized across calls.
    w1p, b1p, w2p, b2p = prepare_params(w1, b1, w2, b2)

    # force_pallas so the Pallas kernel itself is exercised at this tiny batch.
    out = net_forward(x, w1p, b1p, w2p, b2p, force_pallas=True)
    out = jax.block_until_ready(out)

    assert out.shape == (B, OUT_DIM)
    # approx reciprocal -> softmax rows sum to 1 only to ~1e-3
    row_sums = jnp.sum(out, axis=1)
    assert jnp.allclose(row_sums, jnp.ones((B,)), atol=3e-3)
    # loose check vs. f32 reference (bf16 weights/x + approx rcp -> small prob error)
    ref = reference_forward(x, w1, b1, w2, b2)
    assert jnp.max(jnp.abs(out - ref)) < 1e-2

    print("KERNEL_OK")
</pallas_src>

<mosaic_0001>
module attributes {stable_mosaic.version = 11 : i64} {
  func.func @net_kernel(%arg0: i32, %arg1: memref<16x225xbf16, #tpu.memory_space<vmem>>, %arg2: memref<225x384xbf16, #tpu.memory_space<vmem>>, %arg3: memref<1x384xf32, #tpu.memory_space<vmem>>, %arg4: memref<384x225xbf16, #tpu.memory_space<vmem>>, %arg5: memref<1x225xf32, #tpu.memory_space<vmem>>, %arg6: memref<16x225xf32, #tpu.memory_space<vmem>>) attributes {dimension_semantics = [#tpu.dimension_semantics<parallel>], iteration_bounds = array<i64: 1>, scalar_prefetch = 0 : i64, scratch_operands = 0 : i64, tpu.core_type = #tpu.core_type<tc>, window_params = [{transform_indices = @transform_0, window_bounds = array<i64: 16, 225>}, {pipeline_mode = #tpu.pipeline_mode<synchronous>, transform_indices = @transform_1, window_bounds = array<i64: 225, 384>}, {pipeline_mode = #tpu.pipeline_mode<synchronous>, transform_indices = @transform_2, window_bounds = array<i64: 1, 384>}, {pipeline_mode = #tpu.pipeline_mode<synchronous>, transform_indices = @transform_3, window_bounds = array<i64: 384, 225>}, {pipeline_mode = #tpu.pipeline_mode<synchronous>, transform_indices = @transform_4, window_bounds = array<i64: 1, 225>}, {transform_indices = @transform_5, window_bounds = array<i64: 16, 225>}]} {
    %c0 = arith.constant 0 : index
    %c0_0 = arith.constant 0 : index
    %0 = vector.load %arg1[%c0, %c0_0] : memref<16x225xbf16, #tpu.memory_space<vmem>>, vector<16x225xbf16>
    %c0_1 = arith.constant 0 : index
    %c0_2 = arith.constant 0 : index
    %1 = vector.load %arg2[%c0_1, %c0_2] : memref<225x384xbf16, #tpu.memory_space<vmem>>, vector<225x384xbf16>
    %cst = arith.constant dense<0.000000e+00> : vector<16x384xf32>
    %2 = tpu.matmul %0, %1, %cst {dimension_numbers = #tpu.dot_dimension_numbers<[1], [0], [0], [1], [0, 0, 1, 1], [], []>} : vector<16x225xbf16>, vector<225x384xbf16>, vector<16x384xf32> -> vector<16x384xf32>
    %c0_3 = arith.constant 0 : index
    %c0_4 = arith.constant 0 : index
    %3 = vector.load %arg3[%c0_3, %c0_4] : memref<1x384xf32, #tpu.memory_space<vmem>>, vector<1x384xf32>
    %4 = vector.broadcast %3 : vector<1x384xf32> to vector<16x384xf32>
    %5 = arith.addf %2, %4 : vector<16x384xf32>
    %cst_5 = arith.constant 0.000000e+00 : f32
    %6 = vector.broadcast %cst_5 : f32 to vector<16x384xf32>
    %7 = arith.maximumf %5, %6 : vector<16x384xf32>
    %8 = arith.truncf %7 : vector<16x384xf32> to vector<16x384xbf16>
    %c0_6 = arith.constant 0 : index
    %c0_7 = arith.constant 0 : index
    %9 = vector.load %arg4[%c0_6, %c0_7] : memref<384x225xbf16, #tpu.memory_space<vmem>>, vector<384x225xbf16>
    %cst_8 = arith.constant dense<0.000000e+00> : vector<16x225xf32>
    %10 = tpu.matmul %8, %9, %cst_8 {dimension_numbers = #tpu.dot_dimension_numbers<[1], [0], [0], [1], [0, 0, 1, 1], [], []>} : vector<16x384xbf16>, vector<384x225xbf16>, vector<16x225xf32> -> vector<16x225xf32>
    %c0_9 = arith.constant 0 : index
    %c0_10 = arith.constant 0 : index
    %11 = vector.load %arg5[%c0_9, %c0_10] : memref<1x225xf32, #tpu.memory_space<vmem>>, vector<1x225xf32>
    %12 = vector.broadcast %11 : vector<1x225xf32> to vector<16x225xf32>
    %13 = arith.addf %10, %12 : vector<16x225xf32>
    %cst_11 = arith.constant dense<0xFF800000> : vector<16xf32>
    %14 = vector.multi_reduction <maximumf>, %13, %cst_11 [1] : vector<16x225xf32> to vector<16xf32>
    %15 = vector.shape_cast %14 : vector<16xf32> to vector<16x1xf32>
    %16 = vector.broadcast %15 : vector<16x1xf32> to vector<16x225xf32>
    %17 = arith.subf %13, %16 : vector<16x225xf32>
    %18 = math.exp %17 : vector<16x225xf32>
    %cst_12 = arith.constant dense<0.000000e+00> : vector<16xf32>
    %19 = vector.multi_reduction <add>, %18, %cst_12 [1] : vector<16x225xf32> to vector<16xf32>
    %20 = vector.shape_cast %19 : vector<16xf32> to vector<16x1xf32>
    %21 = tpu.reciprocal %20 {approx = true} : vector<16x1xf32> -> vector<16x1xf32>
    %22 = vector.broadcast %21 : vector<16x1xf32> to vector<16x225xf32>
    %23 = arith.mulf %18, %22 : vector<16x225xf32>
    %c0_13 = arith.constant 0 : index
    %c0_14 = arith.constant 0 : index
    %24 = vector.load %arg6[%c0_13, %c0_14] : memref<16x225xf32, #tpu.memory_space<vmem>>, vector<16x225xf32>
    tpu.vector_store %arg6[%c0_13, %c0_14], %23 {strides = array<i32>} : memref<16x225xf32, #tpu.memory_space<vmem>>, vector<16x225xf32>,
    return
  }
  func.func @transform_0(%arg0: i32) -> (i32, i32) {
    %c0_i32 = arith.constant 0 : i32
    %c0_i32_0 = arith.constant 0 : i32
    return %arg0, %c0_i32 : i32, i32
  }
  func.func @transform_1(%arg0: i32) -> (i32, i32) {
    %c0_i32 = arith.constant 0 : i32
    %c0_i32_0 = arith.constant 0 : i32
    %c0_i32_1 = arith.constant 0 : i32
    return %c0_i32, %c0_i32_0 : i32, i32
  }
  func.func @transform_2(%arg0: i32) -> (i32, i32) {
    %c0_i32 = arith.constant 0 : i32
    %c0_i32_0 = arith.constant 0 : i32
    %c0_i32_1 = arith.constant 0 : i32
    return %c0_i32, %c0_i32_0 : i32, i32
  }
  func.func @transform_3(%arg0: i32) -> (i32, i32) {
    %c0_i32 = arith.constant 0 : i32
    %c0_i32_0 = arith.constant 0 : i32
    %c0_i32_1 = arith.constant 0 : i32
    return %c0_i32, %c0_i32_0 : i32, i32
  }
  func.func @transform_4(%arg0: i32) -> (i32, i32) {
    %c0_i32 = arith.constant 0 : i32
    %c0_i32_0 = arith.constant 0 : i32
    %c0_i32_1 = arith.constant 0 : i32
    return %c0_i32, %c0_i32_0 : i32, i32
  }
  func.func @transform_5(%arg0: i32) -> (i32, i32) {
    %c0_i32 = arith.constant 0 : i32
    %c0_i32_0 = arith.constant 0 : i32
    return %arg0, %c0_i32 : i32, i32
  }
}

</mosaic_0001>

<llo_original>
// kernel: _net_forward_pallas.1
$region0: #{_net_forward_pallas.1}
  #allocation0 [shape = 'u32[]', space=smem, size = 0x4, offset = 0x4, fixed_abs, tag = 'smem constant byte address 0x4 - core index']
  #allocation1 [shape = 'u32[144,128]{1,0:T(1,128)}', space=vmem, size = 0x12000, scoped, tag = 'internal scratch']
  %s0 = inlined_call_operand.vmem [shape: bf16[16,225], index: 0, kind: input, shape index: {}]
  %s1 = inlined_call_operand.vmem [shape: bf16[225,384], index: 1, kind: input, shape index: {}]
  %s2 = inlined_call_operand.vmem [shape: f32[1,384], index: 2, kind: input, shape index: {}]
  %s3 = inlined_call_operand.vmem [shape: bf16[384,225], index: 3, kind: input, shape index: {}]
  %s4 = inlined_call_operand.vmem [shape: f32[1,225], index: 4, kind: input, shape index: {}]
  %s5 = inlined_call_operand.vmem [shape: f32[16,225], index: 5, kind: output, shape index: {}]
  %s6 = sld [smem:[#allocation0]]
  $region30: #{_net_forward_pallas.1} parent=0
    _
  %s8 = ssub.s32 1, %s6
  %s9 = scalar_select 0, %s8, %s6
  // Predicated region
  $region2: #{_net_forward_pallas.1} parent=0 // pred_check
    _
  $region3: #{_net_forward_pallas.1} parent=0 // pred_check_branch
    %11 = sbr.rel (0) target = $region5
  $region4: #{_net_forward_pallas.1} parent=0 // pred_region
    _
  $region5: #{_net_forward_pallas.1} parent=0 // pred_fallthru
    _
  // Predicated region
  $region6: #{_net_forward_pallas.1} parent=0 // pred_check
    _
  $region7: #{_net_forward_pallas.1} parent=0 // pred_check_branch
    %13 = sbr.rel (0) target = $region9
  $region8: #{_net_forward_pallas.1} parent=0 // pred_region
    _
  $region9: #{_net_forward_pallas.1} parent=0 // pred_fallthru
    _
  // Predicated region
  $region10: #{_net_forward_pallas.1} parent=0 // pred_check
    _
  $region11: #{_net_forward_pallas.1} parent=0 // pred_check_branch
    %15 = sbr.rel (0) target = $region13
  $region12: #{_net_forward_pallas.1} parent=0 // pred_region
    _
  $region13: #{_net_forward_pallas.1} parent=0 // pred_fallthru
    _
  // Predicated region
  $region14: #{_net_forward_pallas.1} parent=0 // pred_check
    _
  $region15: #{_net_forward_pallas.1} parent=0 // pred_check_branch
    %17 = sbr.rel (0) target = $region17
  $region16: #{_net_forward_pallas.1} parent=0 // pred_region
    _
  $region17: #{_net_forward_pallas.1} parent=0 // pred_fallthru
    _
  // Predicated region
  $region18: #{_net_forward_pallas.1} parent=0 // pred_check
    _
  $region19: #{_net_forward_pallas.1} parent=0 // pred_check_branch
    %19 = sbr.rel (0) target = $region21
  $region20: #{_net_forward_pallas.1} parent=0 // pred_region
    _
  $region21: #{_net_forward_pallas.1} parent=0 // pred_fallthru
    _
  %v21 = vld [vmem:[%s0] sm:$0xff]
  %v22 = vld [vmem:[%s0 + $0x8] sm:$0xff]
  %v23 = vld [vmem:[%s1] sm:$0xff]
  %v24 = vld [vmem:[%s1 + $0x8] sm:$0xf]
  %v25 = vld [vmem:[%s1 + $0xc] sm:$0xff]
  %v26 = vld [vmem:[%s1 + $0x14] sm:$0xf]
  %v27 = vld [vmem:[%s1 + $0x18] sm:$0xff]
  %v28 = vld [vmem:[%s1 + $0x20] sm:$0xf]
  %v29 = vld [vmem:[%s1 + $0x24] sm:$0xff]
  %v30 = vld [vmem:[%s1 + $0x2c] sm:$0xf]
  %v31 = vld [vmem:[%s1 + $0x30] sm:$0xff]
  %v32 = vld [vmem:[%s1 + $0x38] sm:$0xf]
  %v33 = vld [vmem:[%s1 + $0x3c] sm:$0xff]
  %v34 = vld [vmem:[%s1 + $0x44] sm:$0xf]
  %v35 = vld [vmem:[%s1 + $0x48] sm:$0xff]
  %v36 = vld [vmem:[%s1 + $0x50] sm:$0xf]
  %v37 = vld [vmem:[%s1 + $0x54] sm:$0xff]
  %v38 = vld [vmem:[%s1 + $0x5c] sm:$0xf]
  %v39 = vld [vmem:[%s1 + $0x60] sm:$0xff]
  %v40 = vld [vmem:[%s1 + $0x68] sm:$0xf]
  %v41 = vld [vmem:[%s1 + $0x6c] sm:$0xff]
  %v42 = vld [vmem:[%s1 + $0x74] sm:$0xf]
  %v43 = vld [vmem:[%s1 + $0x78] sm:$0xff]
  %v44 = vld [vmem:[%s1 + $0x80] sm:$0xf]
  %v45 = vld [vmem:[%s1 + $0x84] sm:$0xff]
  %v46 = vld [vmem:[%s1 + $0x8c] sm:$0xf]
  %v47 = vld [vmem:[%s1 + $0x90] sm:$0xff]
  %v48 = vld [vmem:[%s1 + $0x98] sm:$0xf]
  %v49 = vld [vmem:[%s1 + $0x9c] sm:$0xff]
  %v50 = vld [vmem:[%s1 + $0xa4] sm:$0xf]
  %v51 = vld [vmem:[%s1 + $0xa8] sm:$0xff]
  %v52 = vld [vmem:[%s1 + $0xb0] sm:$0xf]
  %v53 = vld [vmem:[%s1 + $0xb4] sm:$0xff]
  %v54 = vld [vmem:[%s1 + $0xbc] sm:$0xf]
  %v55 = vld [vmem:[%s1 + $0xc0] sm:$0xff]
  %v56 = vld [vmem:[%s1 + $0xc8] sm:$0xf]
  %v57 = vld [vmem:[%s1 + $0xcc] sm:$0xff]
  %v58 = vld [vmem:[%s1 + $0xd4] sm:$0xf]
  %v59 = vld [vmem:[%s1 + $0xd8] sm:$0xff]
  %v60 = vld [vmem:[%s1 + $0xe0] sm:$0xf]
  %v61 = vld [vmem:[%s1 + $0xe4] sm:$0xff]
  %v62 = vld [vmem:[%s1 + $0xec] sm:$0xf]
  %v63 = vld [vmem:[%s1 + $0xf0] sm:$0xff]
  %v64 = vld [vmem:[%s1 + $0xf8] sm:$0xf]
  %v65 = vld [vmem:[%s1 + $0xfc] sm:$0xff]
  %v66 = vld [vmem:[%s1 + $0x104] sm:$0xf]
  %v67 = vld [vmem:[%s1 + $0x108] sm:$0xff]
  %v68 = vld [vmem:[%s1 + $0x110] sm:$0xf]
  %v69 = vld [vmem:[%s1 + $0x114] sm:$0xff]
  %v70 = vld [vmem:[%s1 + $0x11c] sm:$0xf]
  %v71 = vld [vmem:[%s1 + $0x120] sm:$0xff]
  %v72 = vld [vmem:[%s1 + $0x128] sm:$0xf]
  %v73 = vld [vmem:[%s1 + $0x12c] sm:$0xff]
  %v74 = vld [vmem:[%s1 + $0x134] sm:$0xf]
  %v75 = vld [vmem:[%s1 + $0x138] sm:$0xff]
  %v76 = vld [vmem:[%s1 + $0x140] sm:$0xf]
  %v77 = vld [vmem:[%s1 + $0x144] sm:$0xff]
  %v78 = vld [vmem:[%s1 + $0x14c] sm:$0xf]
  %v79 = vld [vmem:[%s1 + $0x150] sm:$0x11]
  %v80 = vld [vmem:[%s1 + $0x158] sm:$0x1]
  %v81 = vld [vmem:[%s2] sm:$0x7]
  %v83 = vlaneseq
  %v84 = vshrl.u32 %v83, 7
  %v85 = vsub.s32 0, %v84
  %v86 = vrot.slane %v81, %v85
  %v87 = vlaneseq
  %v88 = vshrl.u32 %v87, 7
  %v89 = vsub.s32 1, %v88
  %v90 = vrot.slane %v81, %v89
  %v91 = vlaneseq
  %v92 = vshrl.u32 %v91, 7
  %v93 = vsub.s32 2, %v92
  %v94 = vrot.slane %v81, %v93
  %v100 = vunpack.c.l.b16 %v21
  %v101 = vunpack.c.h.b16 %v21
  %v102 = vunpack.c.l.b16 %v22
  %v103 = vunpack.c.h.b16 %v22
  %v104 = vpack.c.b16 %v102, %v100
  %v105 = vpack.c.b16 %v103, %v101
  %v165 = vunpack.c.l.b16 %v23
  %v166 = vunpack.c.h.b16 %v23
  %v167 = vunpack.c.l.b16 %v24
  %v168 = vunpack.c.l.b16 %v25
  %v169 = vunpack.c.h.b16 %v25
  %v170 = vunpack.c.l.b16 %v26
  %v171 = vunpack.c.l.b16 %v27
  %v172 = vunpack.c.h.b16 %v27
  %v173 = vunpack.c.l.b16 %v28
  %v174 = vunpack.c.l.b16 %v29
  %v175 = vunpack.c.h.b16 %v29
  %v176 = vunpack.c.l.b16 %v30
  %v177 = vunpack.c.l.b16 %v31
  %v178 = vunpack.c.h.b16 %v31
  %v179 = vunpack.c.l.b16 %v32
  %v180 = vunpack.c.l.b16 %v33
  %v181 = vunpack.c.h.b16 %v33
  %v182 = vunpack.c.l.b16 %v34
  %v183 = vunpack.c.l.b16 %v35
  %v184 = vunpack.c.h.b16 %v35
  %v185 = vunpack.c.l.b16 %v36
  %v186 = vunpack.c.l.b16 %v37
  %v187 = vunpack.c.h.b16 %v37
  %v188 = vunpack.c.l.b16 %v38
  %v189 = vunpack.c.l.b16 %v39
  %v190 = vunpack.c.h.b16 %v39
  %v191 = vunpack.c.l.b16 %v40
  %v192 = vunpack.c.l.b16 %v41
  %v193 = vunpack.c.h.b16 %v41
  %v194 = vunpack.c.l.b16 %v42
  %v195 = vunpack.c.l.b16 %v43
  %v196 = vunpack.c.h.b16 %v43
  %v197 = vunpack.c.l.b16 %v44
  %v198 = vunpack.c.l.b16 %v45
  %v199 = vunpack.c.h.b16 %v45
  %v200 = vunpack.c.l.b16 %v46
  %v201 = vunpack.c.l.b16 %v47
  %v202 = vunpack.c.h.b16 %v47
  %v203 = vunpack.c.l.b16 %v48
  %v204 = vunpack.c.l.b16 %v49
  %v205 = vunpack.c.h.b16 %v49
  %v206 = vunpack.c.l.b16 %v50
  %v207 = vunpack.c.l.b16 %v51
  %v208 = vunpack.c.h.b16 %v51
  %v209 = vunpack.c.l.b16 %v52
  %v210 = vunpack.c.l.b16 %v53
  %v211 = vunpack.c.h.b16 %v53
  %v212 = vunpack.c.l.b16 %v54
  %v213 = vunpack.c.l.b16 %v55
  %v214 = vunpack.c.h.b16 %v55
  %v215 = vunpack.c.l.b16 %v56
  %v216 = vunpack.c.l.b16 %v57
  %v217 = vunpack.c.h.b16 %v57
  %v218 = vunpack.c.l.b16 %v58
  %v219 = vunpack.c.l.b16 %v59
  %v220 = vunpack.c.h.b16 %v59
  %v221 = vunpack.c.l.b16 %v60
  %v222 = vunpack.c.l.b16 %v61
  %v223 = vunpack.c.h.b16 %v61
  %v224 = vunpack.c.l.b16 %v62
  %v225 = vunpack.c.l.b16 %v63
  %v226 = vunpack.c.h.b16 %v63
  %v227 = vunpack.c.l.b16 %v64
  %v228 = vunpack.c.l.b16 %v65
  %v229 = vunpack.c.h.b16 %v65
  %v230 = vunpack.c.l.b16 %v66
  %v231 = vunpack.c.l.b16 %v67
  %v232 = vunpack.c.h.b16 %v67
  %v233 = vunpack.c.l.b16 %v68
  %v234 = vunpack.c.l.b16 %v69
  %v235 = vunpack.c.h.b16 %v69
  %v236 = vunpack.c.l.b16 %v70
  %v237 = vunpack.c.l.b16 %v71
  %v238 = vunpack.c.h.b16 %v71
  %v239 = vunpack.c.l.b16 %v72
  %v240 = vunpack.c.l.b16 %v73
  %v241 = vunpack.c.h.b16 %v73
  %v242 = vunpack.c.l.b16 %v74
  %v243 = vunpack.c.l.b16 %v75
  %v244 = vunpack.c.h.b16 %v75
  %v245 = vunpack.c.l.b16 %v76
  %v246 = vunpack.c.l.b16 %v77
  %v247 = vunpack.c.h.b16 %v77
  %v248 = vunpack.c.l.b16 %v78
  %v249 = vunpack.c.l.b16 %v79
  %v250 = vunpack.c.h.b16 %v79
  %v251 = vunpack.c.l.b16 %v80
  %v252 = vpack.c.b16 %v168, %v165
  %v253 = vpack.c.b16 %v169, %v166
  %v254 = vpack.c.b16 %v170, %v167
  %v255 = vpack.c.b16 %v174, %v171
  %v256 = vpack.c.b16 %v175, %v172
  %v257 = vpack.c.b16 %v176, %v173
  %v258 = vpack.c.b16 %v180, %v177
  %v259 = vpack.c.b16 %v181, %v178
  %v260 = vpack.c.b16 %v182, %v179
  %v261 = vpack.c.b16 %v186, %v183
  %v262 = vpack.c.b16 %v187, %v184
  %v263 = vpack.c.b16 %v188, %v185
  %v264 = vpack.c.b16 %v192, %v189
  %v265 = vpack.c.b16 %v193, %v190
  %v266 = vpack.c.b16 %v194, %v191
  %v267 = vpack.c.b16 %v198, %v195
  %v268 = vpack.c.b16 %v199, %v196
  %v269 = vpack.c.b16 %v200, %v197
  %v270 = vpack.c.b16 %v204, %v201
  %v271 = vpack.c.b16 %v205, %v202
  %v272 = vpack.c.b16 %v206, %v203
  %v273 = vpack.c.b16 %v210, %v207
  %v274 = vpack.c.b16 %v211, %v208
  %v275 = vpack.c.b16 %v212, %v209
  %v276 = vpack.c.b16 %v216, %v213
  %v277 = vpack.c.b16 %v217, %v214
  %v278 = vpack.c.b16 %v218, %v215
  %v279 = vpack.c.b16 %v222, %v219
  %v280 = vpack.c.b16 %v223, %v220
  %v281 = vpack.c.b16 %v224, %v221
  %v282 = vpack.c.b16 %v228, %v225
  %v283 = vpack.c.b16 %v229, %v226
  %v284 = vpack.c.b16 %v230, %v227
  %v285 = vpack.c.b16 %v234, %v231
  %v286 = vpack.c.b16 %v235, %v232
  %v287 = vpack.c.b16 %v236, %v233
  %v288 = vpack.c.b16 %v240, %v237
  %v289 = vpack.c.b16 %v241, %v238
  %v290 = vpack.c.b16 %v242, %v239
  %v291 = vpack.c.b16 %v246, %v243
  %v292 = vpack.c.b16 %v247, %v244
  %v293 = vpack.c.b16 %v248, %v245
  %v294 = vpack.c.b16 %v249, %v249
  %v295 = vpack.c.b16 %v250, %v250
  %v296 = vpack.c.b16 %v251, %v251
  %vm339 = vcmask 793600
  %v341 = vsel %vm339, %v105, 0
  %vm343 = vcmask 1040384
  %v344 = vsel 0, 4294967295, 65535
  %v345 = vsel %vm343, %v344, 0
  %v347 = vand.u32 %v294, %v345
  %v350 = vand.u32 %v295, %v345
  %v353 = vand.u32 %v296, %v345
  %355 = vmatprep.subr.bf16.mxu0 %v253
  %356 = vmatpush1.bf16.msra.mxu0 %v252
  %357 = vmatprep.subr.bf16.mxu0 %v256
  %358 = vmatpush1.bf16.msra.mxu0 %v255
  %359 = vmatprep.subr.bf16.mxu0 %v259
  %360 = vmatpush1.bf16.msra.mxu0 %v258
  %361 = vmatprep.subr.bf16.mxu0 %v262
  %362 = vmatpush1.bf16.msra.mxu0 %v261
  %363 = vmatprep.subr.bf16.mxu0 %v265
  %364 = vmatpush1.bf16.msra.mxu0 %v264
  %365 = vmatprep.subr.bf16.mxu0 %v268
  %366 = vmatpush1.bf16.msra.mxu0 %v267
  %367 = vmatprep.subr.bf16.mxu0 %v271
  %368 = vmatpush1.bf16.msra.mxu0 %v270
  %369 = vmatprep.subr.bf16.mxu0 %v274
  %370 = vmatpush1.bf16.msra.mxu0 %v273
  %371 = vmatprep.subr.bf16.mxu0 %v277
  %372 = vmatpush1.bf16.msra.mxu0 %v276
  %373 = vmatprep.subr.bf16.mxu0 %v280
  %374 = vmatpush1.bf16.msra.mxu0 %v279
  %375 = vmatprep.subr.bf16.mxu0 %v283
  %376 = vmatpush1.bf16.msra.mxu0 %v282
  %377 = vmatprep.subr.bf16.mxu0 %v286
  %378 = vmatpush1.bf16.msra.mxu0 %v285
  %379 = vmatprep.subr.bf16.mxu0 %v289
  %380 = vmatpush1.bf16.msra.mxu0 %v288
  %381 = vmatprep.subr.bf16.mxu0 %v292
  %382 = vmatpush1.bf16.msra.mxu0 %v291
  %383 = vmatprep.subr.bf16.mxu0 %v350
  %384 = vmatpush1.bf16.msra.mxu0 %v347
  %385 = vmatprep.subr.bf16.mxu0 0
  %386 = vmatpush1.bf16.msra.mxu0 0
  %387 = vmatprep.mubr.bf16.mxu0 %v341
  %388 = vmatmul.mubr.bf16.gmra.mrb[0].mxu0 %v104
  %v389 = vpop.f32.mrb[0].mxu0
  %v390 = vadd.f32 %v86, %v389
  %v391 = vpop.f32.mrb[0].mxu0
  %v392 = vadd.f32 %v90, %v391
  %v393 = vpop.f32.mrb[0].mxu0
  %v394 = vadd.f32 %v86, %v393
  %v395 = vpop.f32.mrb[0].mxu0
  %v396 = vadd.f32 %v90, %v395
  %397 = vdwg.mxu0
  %398 = vmatprep.subr.bf16.mxu0 0
  %399 = vmatpush1.bf16.msra.mxu0 %v254
  %400 = vmatprep.subr.bf16.mxu0 0
  %401 = vmatpush1.bf16.msra.mxu0 %v257
  %402 = vmatprep.subr.bf16.mxu0 0
  %403 = vmatpush1.bf16.msra.mxu0 %v260
  %404 = vmatprep.subr.bf16.mxu0 0
  %405 = vmatpush1.bf16.msra.mxu0 %v263
  %406 = vmatprep.subr.bf16.mxu0 0
  %407 = vmatpush1.bf16.msra.mxu0 %v266
  %408 = vmatprep.subr.bf16.mxu0 0
  %409 = vmatpush1.bf16.msra.mxu0 %v269
  %410 = vmatprep.subr.bf16.mxu0 0
  %411 = vmatpush1.bf16.msra.mxu0 %v272
  %412 = vmatprep.subr.bf16.mxu0 0
  %413 = vmatpush1.bf16.msra.mxu0 %v275
  %414 = vmatprep.subr.bf16.mxu0 0
  %415 = vmatpush1.bf16.msra.mxu0 %v278
  %416 = vmatprep.subr.bf16.mxu0 0
  %417 = vmatpush1.bf16.msra.mxu0 %v281
  %418 = vmatprep.subr.bf16.mxu0 0
  %419 = vmatpush1.bf16.msra.mxu0 %v284
  %420 = vmatprep.subr.bf16.mxu0 0
  %421 = vmatpush1.bf16.msra.mxu0 %v287
  %422 = vmatprep.subr.bf16.mxu0 0
  %423 = vmatpush1.bf16.msra.mxu0 %v290
  %424 = vmatprep.subr.bf16.mxu0 0
  %425 = vmatpush1.bf16.msra.mxu0 %v293
  %426 = vmatprep.subr.bf16.mxu0 0
  %427 = vmatpush1.bf16.msra.mxu0 %v353
  %428 = vmatprep.subr.bf16.mxu0 0
  %429 = vmatpush1.bf16.msra.mxu0 0
  %430 = vmatprep.mubr.bf16.mxu0 %v341
  %431 = vmatmul.mubr.bf16.gmra.mrb[0].mxu0 %v104
  %v432 = vpop.f32.mrb[0].mxu0
  %v433 = vadd.f32 %v94, %v432
  %v434 = vpop.f32.mrb[0].mxu0
  %v435 = vpop.f32.mrb[0].mxu0
  %v436 = vadd.f32 %v94, %v435
  %v437 = vpop.f32.mrb[0].mxu0
  %438 = vdwg.mxu0
  %v439 = vmax.f32 %v390, 0.0
  %v440 = vmax.f32 %v392, 0.0
  %v441 = vmax.f32 %v433, 0.0
  %v442 = vmax.f32 %v394, 0.0
  %v443 = vmax.f32 %v396, 0.0
  %v444 = vmax.f32 %v436, 0.0
  %v445 = vpack.c.bf16 %v442, %v439
  %v446 = vpack.c.bf16 %v443, %v440
  %v447 = vpack.c.bf16 %v444, %v441
  %v448 = vld [vmem:[%s3] sm:$0xff]
  %v449 = vld [vmem:[%s3 + $0x8] sm:$0xff]
  %v450 = vld [vmem:[%s3 + $0x10] sm:$0xff]
  %v451 = vld [vmem:[%s3 + $0x18] sm:$0xff]
  %v452 = vld [vmem:[%s3 + $0x20] sm:$0xff]
  %v453 = vld [vmem:[%s3 + $0x28] sm:$0xff]
  %v454 = vld [vmem:[%s3 + $0x30] sm:$0xff]
  %v455 = vld [vmem:[%s3 + $0x38] sm:$0xff]
  %v456 = vld [vmem:[%s3 + $0x40] sm:$0xff]
  %v457 = vld [vmem:[%s3 + $0x48] sm:$0xff]
  %v458 = vld [vmem:[%s3 + $0x50] sm:$0xff]
  %v459 = vld [vmem:[%s3 + $0x58] sm:$0xff]
  %v460 = vld [vmem:[%s3 + $0x60] sm:$0xff]
  %v461 = vld [vmem:[%s3 + $0x68] sm:$0xff]
  %v462 = vld [vmem:[%s3 + $0x70] sm:$0xff]
  %v463 = vld [vmem:[%s3 + $0x78] sm:$0xff]
  %v464 = vld [vmem:[%s3 + $0x80] sm:$0xff]
  %v465 = vld [vmem:[%s3 + $0x88] sm:$0xff]
  %v466 = vld [vmem:[%s3 + $0x90] sm:$0xff]
  %v467 = vld [vmem:[%s3 + $0x98] sm:$0xff]
  %v468 = vld [vmem:[%s3 + $0xa0] sm:$0xff]
  %v469 = vld [vmem:[%s3 + $0xa8] sm:$0xff]
  %v470 = vld [vmem:[%s3 + $0xb0] sm:$0xff]
  %v471 = vld [vmem:[%s3 + $0xb8] sm:$0xff]
  %v472 = vld [vmem:[%s3 + $0xc0] sm:$0xff]
  %v473 = vld [vmem:[%s3 + $0xc8] sm:$0xff]
  %v474 = vld [vmem:[%s3 + $0xd0] sm:$0xff]
  %v475 = vld [vmem:[%s3 + $0xd8] sm:$0xff]
  %v476 = vld [vmem:[%s3 + $0xe0] sm:$0xff]
  %v477 = vld [vmem:[%s3 + $0xe8] sm:$0xff]
  %v478 = vld [vmem:[%s3 + $0xf0] sm:$0xff]
  %v479 = vld [vmem:[%s3 + $0xf8] sm:$0xff]
  %v480 = vld [vmem:[%s3 + $0x100] sm:$0xff]
  %v481 = vld [vmem:[%s3 + $0x108] sm:$0xff]
  %v482 = vld [vmem:[%s3 + $0x110] sm:$0xff]
  %v483 = vld [vmem:[%s3 + $0x118] sm:$0xff]
  %v484 = vld [vmem:[%s3 + $0x120] sm:$0xff]
  %v485 = vld [vmem:[%s3 + $0x128] sm:$0xff]
  %v486 = vld [vmem:[%s3 + $0x130] sm:$0xff]
  %v487 = vld [vmem:[%s3 + $0x138] sm:$0xff]
  %v488 = vld [vmem:[%s3 + $0x140] sm:$0xff]
  %v489 = vld [vmem:[%s3 + $0x148] sm:$0xff]
  %v490 = vld [vmem:[%s3 + $0x150] sm:$0xff]
  %v491 = vld [vmem:[%s3 + $0x158] sm:$0xff]
  %v492 = vld [vmem:[%s3 + $0x160] sm:$0xff]
  %v493 = vld [vmem:[%s3 + $0x168] sm:$0xff]
  %v494 = vld [vmem:[%s3 + $0x170] sm:$0xff]
  %v495 = vld [vmem:[%s3 + $0x178] sm:$0xff]
  %v496 = vld [vmem:[%s4] sm:$0x3]
  %v498 = vlaneseq
  %v499 = vshrl.u32 %v498, 7
  %v500 = vsub.s32 0, %v499
  %v501 = vrot.slane %v496, %v500
  %v502 = vlaneseq
  %v503 = vshrl.u32 %v502, 7
  %v504 = vsub.s32 1, %v503
  %v505 = vrot.slane %v496, %v504
  %v556 = vunpack.c.l.b16 %v448
  %v557 = vunpack.c.h.b16 %v448
  %v558 = vunpack.c.l.b16 %v449
  %v559 = vunpack.c.h.b16 %v449
  %v560 = vunpack.c.l.b16 %v450
  %v561 = vunpack.c.h.b16 %v450
  %v562 = vunpack.c.l.b16 %v451
  %v563 = vunpack.c.h.b16 %v451
  %v564 = vunpack.c.l.b16 %v452
  %v565 = vunpack.c.h.b16 %v452
  %v566 = vunpack.c.l.b16 %v453
  %v567 = vunpack.c.h.b16 %v453
  %v568 = vunpack.c.l.b16 %v454
  %v569 = vunpack.c.h.b16 %v454
  %v570 = vunpack.c.l.b16 %v455
  %v571 = vunpack.c.h.b16 %v455
  %v572 = vunpack.c.l.b16 %v456
  %v573 = vunpack.c.h.b16 %v456
  %v574 = vunpack.c.l.b16 %v457
  %v575 = vunpack.c.h.b16 %v457
  %v576 = vunpack.c.l.b16 %v458
  %v577 = vunpack.c.h.b16 %v458
  %v578 = vunpack.c.l.b16 %v459
  %v579 = vunpack.c.h.b16 %v459
  %v580 = vunpack.c.l.b16 %v460
  %v581 = vunpack.c.h.b16 %v460
  %v582 = vunpack.c.l.b16 %v461
  %v583 = vunpack.c.h.b16 %v461
  %v584 = vunpack.c.l.b16 %v462
  %v585 = vunpack.c.h.b16 %v462
  %v586 = vunpack.c.l.b16 %v463
  %v587 = vunpack.c.h.b16 %v463
  %v588 = vunpack.c.l.b16 %v464
  %v589 = vunpack.c.h.b16 %v464
  %v590 = vunpack.c.l.b16 %v465
  %v591 = vunpack.c.h.b16 %v465
  %v592 = vunpack.c.l.b16 %v466
  %v593 = vunpack.c.h.b16 %v466
  %v594 = vunpack.c.l.b16 %v467
  %v595 = vunpack.c.h.b16 %v467
  %v596 = vunpack.c.l.b16 %v468
  %v597 = vunpack.c.h.b16 %v468
  %v598 = vunpack.c.l.b16 %v469
  %v599 = vunpack.c.h.b16 %v469
  %v600 = vunpack.c.l.b16 %v470
  %v601 = vunpack.c.h.b16 %v470
  %v602 = vunpack.c.l.b16 %v471
  %v603 = vunpack.c.h.b16 %v471
  %v604 = vunpack.c.l.b16 %v472
  %v605 = vunpack.c.h.b16 %v472
  %v606 = vunpack.c.l.b16 %v473
  %v607 = vunpack.c.h.b16 %v473
  %v608 = vunpack.c.l.b16 %v474
  %v609 = vunpack.c.h.b16 %v474
  %v610 = vunpack.c.l.b16 %v475
  %v611 = vunpack.c.h.b16 %v475
  %v612 = vunpack.c.l.b16 %v476
  %v613 = vunpack.c.h.b16 %v476
  %v614 = vunpack.c.l.b16 %v477
  %v615 = vunpack.c.h.b16 %v477
  %v616 = vunpack.c.l.b16 %v478
  %v617 = vunpack.c.h.b16 %v478
  %v618 = vunpack.c.l.b16 %v479
  %v619 = vunpack.c.h.b16 %v479
  %v620 = vunpack.c.l.b16 %v480
  %v621 = vunpack.c.h.b16 %v480
  %v622 = vunpack.c.l.b16 %v481
  %v623 = vunpack.c.h.b16 %v481
  %v624 = vunpack.c.l.b16 %v482
  %v625 = vunpack.c.h.b16 %v482
  %v626 = vunpack.c.l.b16 %v483
  %v627 = vunpack.c.h.b16 %v483
  %v628 = vunpack.c.l.b16 %v484
  %v629 = vunpack.c.h.b16 %v484
  %v630 = vunpack.c.l.b16 %v485
  %v631 = vunpack.c.h.b16 %v485
  %v632 = vunpack.c.l.b16 %v486
  %v633 = vunpack.c.h.b16 %v486
  %v634 = vunpack.c.l.b16 %v487
  %v635 = vunpack.c.h.b16 %v487
  %v636 = vunpack.c.l.b16 %v488
  %v637 = vunpack.c.h.b16 %v488
  %v638 = vunpack.c.l.b16 %v489
  %v639 = vunpack.c.h.b16 %v489
  %v640 = vunpack.c.l.b16 %v490
  %v641 = vunpack.c.h.b16 %v490
  %v642 = vunpack.c.l.b16 %v491
  %v643 = vunpack.c.h.b16 %v491
  %v644 = vunpack.c.l.b16 %v492
  %v645 = vunpack.c.h.b16 %v492
  %v646 = vunpack.c.l.b16 %v493
  %v647 = vunpack.c.h.b16 %v493
  %v648 = vunpack.c.l.b16 %v494
  %v649 = vunpack.c.h.b16 %v494
  %v650 = vunpack.c.l.b16 %v495
  %v651 = vunpack.c.h.b16 %v495
  %v652 = vpack.c.b16 %v558, %v556
  %v653 = vpack.c.b16 %v559, %v557
  %v654 = vpack.c.b16 %v562, %v560
  %v655 = vpack.c.b16 %v563, %v561
  %v656 = vpack.c.b16 %v566, %v564
  %v657 = vpack.c.b16 %v567, %v565
  %v658 = vpack.c.b16 %v570, %v568
  %v659 = vpack.c.b16 %v571, %v569
  %v660 = vpack.c.b16 %v574, %v572
  %v661 = vpack.c.b16 %v575, %v573
  %v662 = vpack.c.b16 %v578, %v576
  %v663 = vpack.c.b16 %v579, %v577
  %v664 = vpack.c.b16 %v582, %v580
  %v665 = vpack.c.b16 %v583, %v581
  %v666 = vpack.c.b16 %v586, %v584
  %v667 = vpack.c.b16 %v587, %v585
  %v668 = vpack.c.b16 %v590, %v588
  %v669 = vpack.c.b16 %v591, %v589
  %v670 = vpack.c.b16 %v594, %v592
  %v671 = vpack.c.b16 %v595, %v593
  %v672 = vpack.c.b16 %v598, %v596
  %v673 = vpack.c.b16 %v599, %v597
  %v674 = vpack.c.b16 %v602, %v600
  %v675 = vpack.c.b16 %v603, %v601
  %v676 = vpack.c.b16 %v606, %v604
  %v677 = vpack.c.b16 %v607, %v605
  %v678 = vpack.c.b16 %v610, %v608
  %v679 = vpack.c.b16 %v611, %v609
  %v680 = vpack.c.b16 %v614, %v612
  %v681 = vpack.c.b16 %v615, %v613
  %v682 = vpack.c.b16 %v618, %v616
  %v683 = vpack.c.b16 %v619, %v617
  %v684 = vpack.c.b16 %v622, %v620
  %v685 = vpack.c.b16 %v623, %v621
  %v686 = vpack.c.b16 %v626, %v624
  %v687 = vpack.c.b16 %v627, %v625
  %v688 = vpack.c.b16 %v630, %v628
  %v689 = vpack.c.b16 %v631, %v629
  %v690 = vpack.c.b16 %v634, %v632
  %v691 = vpack.c.b16 %v635, %v633
  %v692 = vpack.c.b16 %v638, %v636
  %v693 = vpack.c.b16 %v639, %v637
  %v694 = vpack.c.b16 %v642, %v640
  %v695 = vpack.c.b16 %v643, %v641
  %v696 = vpack.c.b16 %v646, %v644
  %v697 = vpack.c.b16 %v647, %v645
  %v698 = vpack.c.b16 %v650, %v648
  %v699 = vpack.c.b16 %v651, %v649
  %748 = vmatprep.subr.bf16.mxu0 %v653
  %749 = vmatpush1.bf16.msra.mxu0 %v652
  %750 = vmatprep.subr.bf16.mxu0 %v655
  %751 = vmatpush1.bf16.msra.mxu0 %v654
  %752 = vmatprep.subr.bf16.mxu0 %v657
  %753 = vmatpush1.bf16.msra.mxu0 %v656
  %754 = vmatprep.subr.bf16.mxu0 %v659
  %755 = vmatpush1.bf16.msra.mxu0 %v658
  %756 = vmatprep.subr.bf16.mxu0 %v661
  %757 = vmatpush1.bf16.msra.mxu0 %v660
  %758 = vmatprep.subr.bf16.mxu0 %v663
  %759 = vmatpush1.bf16.msra.mxu0 %v662
  %760 = vmatprep.subr.bf16.mxu0 %v665
  %761 = vmatpush1.bf16.msra.mxu0 %v664
  %762 = vmatprep.subr.bf16.mxu0 %v667
  %763 = vmatpush1.bf16.msra.mxu0 %v666
  %764 = vmatprep.subr.bf16.mxu0 %v669
  %765 = vmatpush1.bf16.msra.mxu0 %v668
  %766 = vmatprep.subr.bf16.mxu0 %v671
  %767 = vmatpush1.bf16.msra.mxu0 %v670
  %768 = vmatprep.subr.bf16.mxu0 %v673
  %769 = vmatpush1.bf16.msra.mxu0 %v672
  %770 = vmatprep.subr.bf16.mxu0 %v675
  %771 = vmatpush1.bf16.msra.mxu0 %v674
  %772 = vmatprep.subr.bf16.mxu0 %v677
  %773 = vmatpush1.bf16.msra.mxu0 %v676
  %774 = vmatprep.subr.bf16.mxu0 %v679
  %775 = vmatpush1.bf16.msra.mxu0 %v678
  %776 = vmatprep.subr.bf16.mxu0 %v681
  %777 = vmatpush1.bf16.msra.mxu0 %v680
  %778 = vmatprep.subr.bf16.mxu0 %v683
  %779 = vmatpush1.bf16.msra.mxu0 %v682
  %780 = vmatprep.mubr.bf16.mxu0 %v446
  %781 = vmatmul.mubr.bf16.gmra.mrb[0].mxu0 %v445
  %v782 = vpop.f32.mrb[0].mxu0
  %v783 = vadd.f32 %v501, %v782
  %v784 = vpop.f32.mrb[0].mxu0
  %v785 = vadd.f32 %v505, %v784
  %v786 = vpop.f32.mrb[0].mxu0
  %v787 = vadd.f32 %v501, %v786
  %v788 = vpop.f32.mrb[0].mxu0
  %v789 = vadd.f32 %v505, %v788
  %790 = vdwg.mxu0
  %791 = vmatprep.subr.bf16.mxu0 %v685
  %792 = vmatpush1.bf16.msra.mxu0 %v684
  %793 = vmatprep.subr.bf16.mxu0 %v687
  %794 = vmatpush1.bf16.msra.mxu0 %v686
  %795 = vmatprep.subr.bf16.mxu0 %v689
  %796 = vmatpush1.bf16.msra.mxu0 %v688
  %797 = vmatprep.subr.bf16.mxu0 %v691
  %798 = vmatpush1.bf16.msra.mxu0 %v690
  %799 = vmatprep.subr.bf16.mxu0 %v693
  %800 = vmatpush1.bf16.msra.mxu0 %v692
  %801 = vmatprep.subr.bf16.mxu0 %v695
  %802 = vmatpush1.bf16.msra.mxu0 %v694
  %803 = vmatprep.subr.bf16.mxu0 %v697
  %804 = vmatpush1.bf16.msra.mxu0 %v696
  %805 = vmatprep.subr.bf16.mxu0 %v699
  %806 = vmatpush1.bf16.msra.mxu0 %v698
  %807 = vmatprep.subr.bf16.mxu0 0
  %808 = vmatpush1.bf16.msra.mxu0 0
  %809 = vmatprep.subr.bf16.mxu0 0
  %810 = vmatpush1.bf16.msra.mxu0 0
  %811 = vmatprep.subr.bf16.mxu0 0
  %812 = vmatpush1.bf16.msra.mxu0 0
  %813 = vmatprep.subr.bf16.mxu0 0
  %814 = vmatpush1.bf16.msra.mxu0 0
  %815 = vmatprep.subr.bf16.mxu0 0
  %816 = vmatpush1.bf16.msra.mxu0 0
  %817 = vmatprep.subr.bf16.mxu0 0
  %818 = vmatpush1.bf16.msra.mxu0 0
  %819 = vmatprep.subr.bf16.mxu0 0
  %820 = vmatpush1.bf16.msra.mxu0 0
  %821 = vmatprep.subr.bf16.mxu0 0
  %822 = vmatpush1.bf16.msra.mxu0 0
  %823 = vmatprep.mubr.bf16.mxu0 0
  %824 = vmatmul.mubr.bf16.gmra.mrb[0].mxu0 %v447
  %v825 = vpop.f32.mrb[0].mxu0
  %v826 = vadd.f32 %v783, %v825
  %v827 = vpop.f32.mrb[0].mxu0
  %v828 = vadd.f32 %v785, %v827
  %v829 = vpop.f32.mrb[0].mxu0
  %v830 = vadd.f32 %v787, %v829
  %v831 = vpop.f32.mrb[0].mxu0
  %v832 = vadd.f32 %v789, %v831
  %833 = vdwg.mxu0
  %v834 = vsel %vm339, %v828, -inf
  %v835 = vmax.f32 %v826, %v834
  %836 = vmax.xlane.f32.xlu0 %v835
  %v837 = vpop.xlane.xlu0 %836
  %v838 = vsel %vm339, %v832, -inf
  %v839 = vmax.f32 %v830, %v838
  %840 = vmax.xlane.f32.xlu0 %v839
  %v841 = vpop.xlane.xlu0 %840
  %v842 = vsub.f32 %v826, %v837
  %v843 = vsub.f32 %v828, %v837
  %v844 = vsub.f32 %v830, %v841
  %v845 = vsub.f32 %v832, %v841
  %v846 = vmul.f32 %v842, 1.442695
  %v847 = vpow.pop %v846
  %v848 = vmul.f32 %v843, 1.442695
  %v849 = vpow.pop %v848
  %v850 = vmul.f32 %v844, 1.442695
  %v851 = vpow.pop %v850
  %v852 = vmul.f32 %v845, 1.442695
  %v853 = vpow.pop %v852
  %v854 = vsel %vm339, %v849, 0.0
  %v855 = vadd.f32 %v847, %v854
  %856 = vadd.xlane.f32.xlu0 %v855
  %v857 = vpop.xlane.xlu0 %856
  %v858 = vsel %vm339, %v853, 0.0
  %v859 = vadd.f32 %v851, %v858
  %860 = vadd.xlane.f32.xlu0 %v859
  %v861 = vpop.xlane.xlu0 %860
  %v862 = vrcp.pop %v857
  %v863 = vrcp.pop %v861
  %v864 = vmul.f32 %v847, %v862
  %v865 = vmul.f32 %v849, %v862
  %v866 = vmul.f32 %v851, %v863
  %v867 = vmul.f32 %v853, %v863
  %868 = vst [vmem:[%s5] sm:$0xff] %v864
  %869 = vst.msk [vmem:[%s5 + $0x8] sm:$0xff] %vm339, %v865
  %870 = vst [vmem:[%s5 + $0x10] sm:$0xff] %v866
  %871 = vst.msk [vmem:[%s5 + $0x18] sm:$0xff] %vm339, %v867
  // Predicated region
  $region22: #{_net_forward_pallas.1} parent=0 // pred_check
    _
  $region23: #{_net_forward_pallas.1} parent=0 // pred_check_branch
    %873 = sbr.rel (0) target = $region25
  $region24: #{_net_forward_pallas.1} parent=0 // pred_region
    _
  $region25: #{_net_forward_pallas.1} parent=0 // pred_fallthru
    _
  // Predicated region
  $region26: #{_net_forward_pallas.1} parent=0 // pred_check
    _
  $region27: #{_net_forward_pallas.1} parent=0 // pred_check_branch
    %875 = sbr.rel (0) target = $region29
  $region28: #{_net_forward_pallas.1} parent=0 // pred_region
    _
  $region29: #{_net_forward_pallas.1} parent=0 // pred_fallthru
    _

</llo_original>
